<compile_context>
chip_gen: v5e
topology: v5e:2x2
jax: 0.10.0
libtpu: 0.0.40
codegen_flags: <defaults>
</compile_context>

<pallas_src>
import functools

import jax
import jax.numpy as jnp
from jax.experimental import pallas as pl
from jax.experimental.pallas import tpu as pltpu


def _biasfree_layernorm_kernel(x_ref, w_ref, o_ref, *, eps):
    """One row tile: [block_rows, C] -> [block_rows, C]."""
    x = x_ref[...].astype(jnp.float32)                         # [bm, C]
    mu = jnp.mean(x, axis=-1, keepdims=True)                   # XLU reduce
    var = jnp.mean(jnp.square(x - mu), axis=-1, keepdims=True)  # unbiased=False
    w = w_ref[...].astype(jnp.float32)                          # [1, C] -> bcast
    # Bias-free: scale x itself (no mean subtraction, no beta).
    o_ref[...] = (x * jax.lax.rsqrt(var + eps) * w).astype(o_ref.dtype)


def _choose_block_rows(m, c, bytes_per_elem, target_bytes=2 << 20):
    """Sublane-aligned row tile; ~2 MiB/buffer; keep >= 2 grid steps."""
    if m <= 8:
        return m
    rows = (target_bytes // max(1, c * bytes_per_elem)) // 8 * 8
    rows = max(8, min(m, rows))
    if rows >= m:                       # would be a single grid step
        half = (m // 2) // 8 * 8        # split so megacore / pipeline have work
        rows = half if half >= 8 else m
    return rows


def bias_free_layer_norm(x, weight, *, eps=1e-5, block_rows=None):
    """x: [..., C], weight: [C] -> [..., C] (same dtype as x)."""
    orig_shape = x.shape
    C = orig_shape[-1]
    M = 1
    for d in orig_shape[:-1]:
        M *= d

    # Fold all leading dims into one row axis; no data movement in HBM.
    x2d = x.reshape(M, C)
    w2d = weight.reshape(1, C)

    if block_rows is None:
        block_rows = _choose_block_rows(M, C, jnp.dtype(x.dtype).itemsize)
    grid = (pl.cdiv(M, block_rows),)

    out2d = pl.pallas_call(
        functools.partial(_biasfree_layernorm_kernel, eps=eps),
        out_shape=jax.ShapeDtypeStruct((M, C), x.dtype),
        grid_spec=pltpu.PrefetchScalarGridSpec(
            num_scalar_prefetch=0,
            grid=grid,
            in_specs=[
                pl.BlockSpec((block_rows, C), lambda i: (i, 0)),  # activations
                pl.BlockSpec((1, C), lambda i: (0, 0)),           # weight (tiny,
                                                                  # same block
                                                                  # every step)
            ],
            out_specs=pl.BlockSpec((block_rows, C), lambda i: (i, 0)),
        ),
        compiler_params=pltpu.CompilerParams(
            dimension_semantics=("parallel",)),   # row tiles are independent
    )(x2d, w2d)

    return out2d.reshape(orig_shape)


def bias_free_layer_norm_ref(x, weight, *, eps=1e-5):
    """Plain-JAX reference mirroring the PyTorch forward."""
    xf = x.astype(jnp.float32)
    mu = jnp.mean(xf, axis=-1, keepdims=True)
    var = jnp.mean((xf - mu) ** 2, axis=-1, keepdims=True)   # unbiased=False
    return (xf / jnp.sqrt(var + eps) * weight.astype(jnp.float32)).astype(x.dtype)


if __name__ == "__main__":
    # Token layout the module sees inside Restormer: [B, H*W, C].
    # C = 128 keeps the lane dimension dense (unmasked stores); B*N = 512 rows
    # fold into two 256-row "parallel" tiles.
    B, N, C = 2, 256, 128          # e.g. 16x16 spatial tokens, 128 channels

    key = jax.random.PRNGKey(0)
    kx, kw = jax.random.split(key)
    x = jax.random.normal(kx, (B, N, C), jnp.float32)
    weight = 1.0 + 0.1 * jax.random.normal(kw, (C,), jnp.float32)

    out = jax.block_until_ready(bias_free_layer_norm(x, weight))

    ref = jax.block_until_ready(bias_free_layer_norm_ref(x, weight))
    assert out.shape == x.shape
    assert jnp.allclose(out, ref, rtol=1e-4, atol=1e-4), "mismatch vs JAX reference"

    print("KERNEL_OK")
</pallas_src>

<mosaic_0001>
module attributes {stable_mosaic.version = 11 : i64} {
  func.func @_biasfree_layernorm_kernel(%arg0: i32, %arg1: memref<256x128xf32, #tpu.memory_space<vmem>>, %arg2: memref<1x128xf32, #tpu.memory_space<vmem>>, %arg3: memref<256x128xf32, #tpu.memory_space<vmem>>) attributes {dimension_semantics = [#tpu.dimension_semantics<parallel>], iteration_bounds = array<i64: 2>, scalar_prefetch = 0 : i64, scratch_operands = 0 : i64, tpu.core_type = #tpu.core_type<tc>, window_params = [{transform_indices = @transform_0, window_bounds = array<i64: 256, 128>}, {pipeline_mode = #tpu.pipeline_mode<synchronous>, transform_indices = @transform_1, window_bounds = array<i64: 1, 128>}, {transform_indices = @transform_2, window_bounds = array<i64: 256, 128>}]} {
    %c0 = arith.constant 0 : index
    %c0_0 = arith.constant 0 : index
    %0 = vector.load %arg1[%c0, %c0_0] : memref<256x128xf32, #tpu.memory_space<vmem>>, vector<256x128xf32>
    %cst = arith.constant dense<0.000000e+00> : vector<256xf32>
    %1 = vector.multi_reduction <add>, %0, %cst [1] : vector<256x128xf32> to vector<256xf32>
    %2 = vector.shape_cast %1 : vector<256xf32> to vector<256x1xf32>
    %cst_1 = arith.constant 1.280000e+02 : f32
    %3 = vector.broadcast %cst_1 : f32 to vector<256x1xf32>
    %4 = arith.divf %2, %3 : vector<256x1xf32>
    %5 = vector.broadcast %4 : vector<256x1xf32> to vector<256x128xf32>
    %6 = arith.subf %0, %5 : vector<256x128xf32>
    %7 = arith.mulf %6, %6 : vector<256x128xf32>
    %cst_2 = arith.constant dense<0.000000e+00> : vector<256xf32>
    %8 = vector.multi_reduction <add>, %7, %cst_2 [1] : vector<256x128xf32> to vector<256xf32>
    %9 = vector.shape_cast %8 : vector<256xf32> to vector<256x1xf32>
    %cst_3 = arith.constant 1.280000e+02 : f32
    %10 = vector.broadcast %cst_3 : f32 to vector<256x1xf32>
    %11 = arith.divf %9, %10 : vector<256x1xf32>
    %c0_4 = arith.constant 0 : index
    %c0_5 = arith.constant 0 : index
    %12 = vector.load %arg2[%c0_4, %c0_5] : memref<1x128xf32, #tpu.memory_space<vmem>>, vector<1x128xf32>
    %cst_6 = arith.constant 9.99999974E-6 : f32
    %13 = vector.broadcast %cst_6 : f32 to vector<256x1xf32>
    %14 = arith.addf %11, %13 : vector<256x1xf32>
    %15 = math.rsqrt %14 : vector<256x1xf32>
    %16 = vector.broadcast %15 : vector<256x1xf32> to vector<256x128xf32>
    %17 = arith.mulf %0, %16 : vector<256x128xf32>
    %18 = vector.broadcast %12 : vector<1x128xf32> to vector<256x128xf32>
    %19 = arith.mulf %17, %18 : vector<256x128xf32>
    %c0_7 = arith.constant 0 : index
    %c0_8 = arith.constant 0 : index
    %20 = vector.load %arg3[%c0_7, %c0_8] : memref<256x128xf32, #tpu.memory_space<vmem>>, vector<256x128xf32>
    tpu.vector_store %arg3[%c0_7, %c0_8], %19 {strides = array<i32>} : memref<256x128xf32, #tpu.memory_space<vmem>>, vector<256x128xf32>,
    return
  }
  func.func @transform_0(%arg0: i32) -> (i32, i32) {
    %c0_i32 = arith.constant 0 : i32
    %c0_i32_0 = arith.constant 0 : i32
    return %arg0, %c0_i32 : i32, i32
  }
  func.func @transform_1(%arg0: i32) -> (i32, i32) {
    %c0_i32 = arith.constant 0 : i32
    %c0_i32_0 = arith.constant 0 : i32
    %c0_i32_1 = arith.constant 0 : i32
    return %c0_i32, %c0_i32_0 : i32, i32
  }
  func.func @transform_2(%arg0: i32) -> (i32, i32) {
    %c0_i32 = arith.constant 0 : i32
    %c0_i32_0 = arith.constant 0 : i32
    return %arg0, %c0_i32 : i32, i32
  }
}

</mosaic_0001>

<llo_original>
// kernel: tpu_custom_call.1
$region0: #{tpu_custom_call.1}
  #allocation0 [shape = 'u32[]', space=smem, size = 0x4, offset = 0x4, fixed_abs, tag = 'smem constant byte address 0x4 - core index']
  #allocation1 [shape = 'u32[72,128]{1,0:T(1,128)}', space=vmem, size = 0x9000, scoped, tag = 'internal scratch']
  %s0 = inlined_call_operand.hbm [shape: f32[512,128], index: 0, kind: input, shape index: {}]
  %s1 = inlined_call_operand.hbm [shape: f32[1,128], index: 1, kind: input, shape index: {}]
  %s2 = inlined_call_operand.hbm [shape: f32[512,128], index: 2, kind: output, shape index: {}]
  %s3 = sld [smem:[#allocation0]]
  $region49: #{tpu_custom_call.1} parent=0
    _
  %s5 = ssub.s32 1, %s3
  %s6 = scalar_select 0, %s5, %s3
  $region1: #{tpu_custom_call.1} parent=0
    #allocation2 [shape = 'u8[262144]{0}', space=vmem, size = 0x40000, scoped, tag = 'input window, operand 0']
    #allocation3 [shape = 's32[2]{0}', space=sflag, size = 0x8, scoped, tag = 'scoped memory for tpu_custom_call.1']
    #allocation4 [shape = 's32[2]{0}', space=sflag, size = 0x8, scoped, tag = 'scoped memory for tpu_custom_call.1']
    #allocation5 [shape = 'u8[512]{0}', space=vmem, size = 0x400, scoped, tag = 'input window, operand 1, single buffered']
    #allocation6 [shape = 's32[1]{0}', space=sflag, size = 0x4, scoped, tag = 'scoped memory for tpu_custom_call.1']
    #allocation7 [shape = 'u8[262144]{0}', space=vmem, size = 0x40000, scoped, tag = 'output window, operand 0']
    %7 = vsyncpa [#allocation3], 0
    %s8 = scalar_lea.sflag [#allocation3], 1
    %9 = vsyncpa %s8, 0
    %10 = vsyncpa [#allocation6], 0
    %11 = vsyncpa [#allocation4], 0
    %s12 = scalar_lea.sflag [#allocation4], 1
    %13 = vsyncpa %s12, 0
    loop: start=0, step=1, limit=4
    $region2: #{tpu_custom_call.1} parent=1 // loop_pre_header
      _
    $region3: #{tpu_custom_call.1} parent=1 // loop_header
      %s15 = sphi 0, %s19
      %p16 = scmp.ge.s32.totalorder %s15, 4
      %s25 = sphi 0, %s27
      %s28 = sphi 0, %s25
      %s29 = sphi 0, %s28
      %s45 = sphi 0, %s29
      %s49 = sphi 0, %s49
      %s51 = sphi 0, %s49
      %s52 = sphi 0, %s51
      %s66 = sphi 0, %s52
      %s72 = sphi 0, %s74
      %s75 = sphi 0, %s72
      %s76 = sphi 0, %s75
      %s92 = sphi 0, %s76
    $region4: #{tpu_custom_call.1} parent=1 // loop_header_branch
      %18 = sbr.rel (%p16) target = $region8
    $region5: #{tpu_custom_call.1} parent=1 // loop_body
      %s20 = ssub.s32 %s15, 1
      %s21 = ssub.s32 %s15, 2
      %s22 = sadd.s32 %s15, 1
      %s23 = ssub.s32 %s15, %s22
      %p24 = scmp.eq.s32.totalorder %s23, 0
      %s26 = sadd.s32 %s25, 1
      %s27 = scalar_select %p24, %s25, %s26
      %p30 = pneg %p24
      %p31 = scmp.eq.s32.totalorder %s15, 1
      %p32 = por %p30, %p31
      %p33 = scmp.ne.s32.totalorder %s25, %s28
      %p34 = scmp.eq.s32.totalorder %s15, 0
      %p35 = por %p33, %p34
      %p36 = scmp.ne.s32.totalorder %s25, %s28
      %p37 = scmp.eq.s32.totalorder %s20, 1
      %p38 = por %p36, %p37
      %p39 = scmp.ne.s32.totalorder %s28, %s29
      %p40 = scmp.eq.s32.totalorder %s20, 0
      %p41 = por %p39, %p40
      %p42 = scmp.ne.s32.totalorder %s28, %s29
      %p43 = scmp.eq.s32.totalorder %s21, 1
      %p44 = por %p42, %p43
      %p46 = scmp.ne.s32.totalorder %s29, %s45
      %p47 = scmp.eq.s32.totalorder %s21, 0
      %p48 = por %p46, %p47
      %s50 = sadd.s32 %s49, 1
      %p53 = scmp.eq.s32.totalorder %s15, 1
      %p54 = scmp.ne.s32.totalorder %s49, %s51
      %p55 = scmp.eq.s32.totalorder %s15, 0
      %p56 = por %p54, %p55
      %p57 = scmp.ne.s32.totalorder %s49, %s51
      %p58 = scmp.eq.s32.totalorder %s20, 1
      %p59 = por %p57, %p58
      %p60 = scmp.ne.s32.totalorder %s51, %s52
      %p61 = scmp.eq.s32.totalorder %s20, 0
      %p62 = por %p60, %p61
      %p63 = scmp.ne.s32.totalorder %s51, %s52
      %p64 = scmp.eq.s32.totalorder %s21, 1
      %p65 = por %p63, %p64
      %p67 = scmp.ne.s32.totalorder %s52, %s66
      %p68 = scmp.eq.s32.totalorder %s21, 0
      %p69 = por %p67, %p68
      %s70 = ssub.s32 %s15, %s22
      %p71 = scmp.eq.s32.totalorder %s70, 0
      %s73 = sadd.s32 %s72, 1
      %s74 = scalar_select %p71, %s72, %s73
      %p77 = pneg %p71
      %p78 = scmp.eq.s32.totalorder %s15, 1
      %p79 = por %p77, %p78
      %p80 = scmp.ne.s32.totalorder %s72, %s75
      %p81 = scmp.eq.s32.totalorder %s15, 0
      %p82 = por %p80, %p81
      %p83 = scmp.ne.s32.totalorder %s72, %s75
      %p84 = scmp.eq.s32.totalorder %s20, 1
      %p85 = por %p83, %p84
      %p86 = scmp.ne.s32.totalorder %s75, %s76
      %p87 = scmp.eq.s32.totalorder %s20, 0
      %p88 = por %p86, %p87
      %p89 = scmp.ne.s32.totalorder %s75, %s76
      %p90 = scmp.eq.s32.totalorder %s21, 1
      %p91 = por %p89, %p90
      %p93 = scmp.ne.s32.totalorder %s76, %s92
      %p94 = scmp.eq.s32.totalorder %s21, 0
      %p95 = por %p93, %p94
      %p96 = scmp.le.s32.totalorder 1, %s15
      %p97 = scmp.lt.s32.totalorder %s15, 3
      %p98 = pnand %p96, %p97
      %p99 = pneg %p98
      // Predicated region
      $region9: #{tpu_custom_call.1} parent=5 // pred_check
        _
      $region10: #{tpu_custom_call.1} parent=5 // pred_check_branch
        %101 = sbr.rel (%p98) target = $region12
      $region11: #{tpu_custom_call.1} parent=5 // pred_region
        %s102 = ssub.s32 %s15, 1
        // Predicated region
        $region13: #{tpu_custom_call.1} parent=11 // pred_check
          %p103 = pneg %p62
        $region14: #{tpu_custom_call.1} parent=11 // pred_check_branch
          %105 = sbr.rel (%p103) target = $region16
        $region15: #{tpu_custom_call.1} parent=11 // pred_region
          %107 = vsyncadd [#allocation6], 0
          %s109 = sshll.u32 %s1, 4
          %s110 = int_to_ptr.hbm [resolvable:$true] %s109
          %s111 = sshll.u32 [#allocation5], 4
          %s112 = int_to_ptr.vmem [resolvable:$true] %s111
          %114 = dma.hbm_to_vmem [thread:$0]  %s110, 16, %s112, [#allocation6]
        $region16: #{tpu_custom_call.1} parent=11 // pred_fallthru
          _
      $region12: #{tpu_custom_call.1} parent=5 // pred_fallthru
        _
      %p115 = scmp.lt.s32.totalorder %s15, 2
      // Predicated region
      $region17: #{tpu_custom_call.1} parent=5 // pred_check
        %p116 = pneg %p115
      $region18: #{tpu_custom_call.1} parent=5 // pred_check_branch
        %118 = sbr.rel (%p116) target = $region20
      $region19: #{tpu_custom_call.1} parent=5 // pred_region
        // Predicated region
        $region21: #{tpu_custom_call.1} parent=19 // pred_check
          %p119 = pneg %p35
        $region22: #{tpu_custom_call.1} parent=19 // pred_check_branch
          %121 = sbr.rel (%p119) target = $region24
        $region23: #{tpu_custom_call.1} parent=19 // pred_region
          %s122 = sand.u32 %s25, 1
          %s123 = scalar_lea.sflag [#allocation3], %s122
          %s124 = sand.u32 %s25, 1
          %s125 = smul.addr %s124, 256
          %s126 = scalar_lea.vmem [#allocation2], %s125
          %s127 = smul.u32 32, %s15
          %129 = vsyncadd %s123, 0
          %s130 = smul.addr %s127, 8
          %s131 = scalar_lea.hbm %s0, %s130
          %s132 = sshll.u32 %s131, 4
          %s133 = int_to_ptr.hbm [resolvable:$true] %s132
          %s134 = sshll.u32 %s126, 4
          %s135 = int_to_ptr.vmem [resolvable:$true] %s134
          %140 = dma.hbm_to_vmem [thread:$0]  %s133, 4096, %s135, %s123, 128, 128, 8
        $region24: #{tpu_custom_call.1} parent=19 // pred_fallthru
          _
      $region20: #{tpu_custom_call.1} parent=5 // pred_fallthru
        _
      %p141 = scmp.le.s32.totalorder 1, %s15
      %p142 = scmp.lt.s32.totalorder %s15, 3
      %p143 = pnand %p141, %p142
      %p144 = pneg %p143
      // Predicated region
      $region25: #{tpu_custom_call.1} parent=5 // pred_check
        _
      $region26: #{tpu_custom_call.1} parent=5 // pred_check_branch
        %146 = sbr.rel (%p143) target = $region28
      $region27: #{tpu_custom_call.1} parent=5 // pred_region
        %s147 = ssub.s32 %s15, 1
        %s148 = sand.u32 %s28, 1
        %s149 = scalar_lea.sflag [#allocation3], %s148
        %s150 = sand.u32 %s28, 1
        %s151 = smul.addr %s150, 256
        %s152 = scalar_lea.vmem [#allocation2], %s151
        // Predicated region
        $region29: #{tpu_custom_call.1} parent=27 // pred_check
          %p153 = pneg %p41
        $region30: #{tpu_custom_call.1} parent=27 // pred_check_branch
          %155 = sbr.rel (%p153) target = $region32
        $region31: #{tpu_custom_call.1} parent=27 // pred_region
          %157 = dma.done %s149, 4096
        $region32: #{tpu_custom_call.1} parent=27 // pred_fallthru
          _
        // Predicated region
        $region33: #{tpu_custom_call.1} parent=27 // pred_check
          %p158 = pneg %p62
        $region34: #{tpu_custom_call.1} parent=27 // pred_check_branch
          %160 = sbr.rel (%p158) target = $region36
        $region35: #{tpu_custom_call.1} parent=27 // pred_region
          %162 = dma.done [#allocation6], 16
        $region36: #{tpu_custom_call.1} parent=27 // pred_fallthru
          _
        %s163 = sand.u32 %s28, 1
        %s164 = scalar_lea.sflag [#allocation3], %s163
        %s165 = sand.u32 %s28, 1
        %s166 = smul.addr %s165, 256
        %s167 = scalar_lea.vmem [#allocation2], %s166
        %p168 = pneg %p41
        %p169 = pneg %p38
        %p170 = pneg %p62
        %p171 = pneg %p59
        %p172 = pneg %p88
        %p173 = pneg %p85
        %s174 = sand.u32 %s75, 1
        %s175 = scalar_lea.sflag [#allocation4], %s174
        %s176 = sand.u32 %s75, 1
        %s177 = smul.addr %s176, 256
        %s178 = scalar_lea.vmem [#allocation7], %s177
        %s179 = smul.u32 32, %s20
        %s180 = smul.u32 32, %s20
        %v181 = vld [vmem:[%s152] sm:$0xff]
        %v182 = vld [vmem:[%s152 + $0x8] sm:$0xff]
        %v183 = vld [vmem:[%s152 + $0x10] sm:$0xff]
        %v184 = vld [vmem:[%s152 + $0x18] sm:$0xff]
        %v185 = vld [vmem:[%s152 + $0x20] sm:$0xff]
        %v186 = vld [vmem:[%s152 + $0x28] sm:$0xff]
        %v187 = vld [vmem:[%s152 + $0x30] sm:$0xff]
        %v188 = vld [vmem:[%s152 + $0x38] sm:$0xff]
        %v189 = vld [vmem:[%s152 + $0x40] sm:$0xff]
        %v190 = vld [vmem:[%s152 + $0x48] sm:$0xff]
        %v191 = vld [vmem:[%s152 + $0x50] sm:$0xff]
        %v192 = vld [vmem:[%s152 + $0x58] sm:$0xff]
        %v193 = vld [vmem:[%s152 + $0x60] sm:$0xff]
        %v194 = vld [vmem:[%s152 + $0x68] sm:$0xff]
        %v195 = vld [vmem:[%s152 + $0x70] sm:$0xff]
        %v196 = vld [vmem:[%s152 + $0x78] sm:$0xff]
        %v197 = vld [vmem:[%s152 + $0x80] sm:$0xff]
        %v198 = vld [vmem:[%s152 + $0x88] sm:$0xff]
        %v199 = vld [vmem:[%s152 + $0x90] sm:$0xff]
        %v200 = vld [vmem:[%s152 + $0x98] sm:$0xff]
        %v201 = vld [vmem:[%s152 + $0xa0] sm:$0xff]
        %v202 = vld [vmem:[%s152 + $0xa8] sm:$0xff]
        %v203 = vld [vmem:[%s152 + $0xb0] sm:$0xff]
        %v204 = vld [vmem:[%s152 + $0xb8] sm:$0xff]
        %v205 = vld [vmem:[%s152 + $0xc0] sm:$0xff]
        %v206 = vld [vmem:[%s152 + $0xc8] sm:$0xff]
        %v207 = vld [vmem:[%s152 + $0xd0] sm:$0xff]
        %v208 = vld [vmem:[%s152 + $0xd8] sm:$0xff]
        %v209 = vld [vmem:[%s152 + $0xe0] sm:$0xff]
        %v210 = vld [vmem:[%s152 + $0xe8] sm:$0xff]
        %v211 = vld [vmem:[%s152 + $0xf0] sm:$0xff]
        %v212 = vld [vmem:[%s152 + $0xf8] sm:$0xff]
        %213 = vadd.xlane.f32.xlu0 %v181
        %v214 = vpop.xlane.xlu0 %213
        %215 = vadd.xlane.f32.xlu0 %v182
        %v216 = vpop.xlane.xlu0 %215
        %217 = vadd.xlane.f32.xlu0 %v183
        %v218 = vpop.xlane.xlu0 %217
        %219 = vadd.xlane.f32.xlu0 %v184
        %v220 = vpop.xlane.xlu0 %219
        %221 = vadd.xlane.f32.xlu0 %v185
        %v222 = vpop.xlane.xlu0 %221
        %223 = vadd.xlane.f32.xlu0 %v186
        %v224 = vpop.xlane.xlu0 %223
        %225 = vadd.xlane.f32.xlu0 %v187
        %v226 = vpop.xlane.xlu0 %225
        %227 = vadd.xlane.f32.xlu0 %v188
        %v228 = vpop.xlane.xlu0 %227
        %229 = vadd.xlane.f32.xlu0 %v189
        %v230 = vpop.xlane.xlu0 %229
        %231 = vadd.xlane.f32.xlu0 %v190
        %v232 = vpop.xlane.xlu0 %231
        %233 = vadd.xlane.f32.xlu0 %v191
        %v234 = vpop.xlane.xlu0 %233
        %235 = vadd.xlane.f32.xlu0 %v192
        %v236 = vpop.xlane.xlu0 %235
        %237 = vadd.xlane.f32.xlu0 %v193
        %v238 = vpop.xlane.xlu0 %237
        %239 = vadd.xlane.f32.xlu0 %v194
        %v240 = vpop.xlane.xlu0 %239
        %241 = vadd.xlane.f32.xlu0 %v195
        %v242 = vpop.xlane.xlu0 %241
        %243 = vadd.xlane.f32.xlu0 %v196
        %v244 = vpop.xlane.xlu0 %243
        %245 = vadd.xlane.f32.xlu0 %v197
        %v246 = vpop.xlane.xlu0 %245
        %247 = vadd.xlane.f32.xlu0 %v198
        %v248 = vpop.xlane.xlu0 %247
        %249 = vadd.xlane.f32.xlu0 %v199
        %v250 = vpop.xlane.xlu0 %249
        %251 = vadd.xlane.f32.xlu0 %v200
        %v252 = vpop.xlane.xlu0 %251
        %253 = vadd.xlane.f32.xlu0 %v201
        %v254 = vpop.xlane.xlu0 %253
        %255 = vadd.xlane.f32.xlu0 %v202
        %v256 = vpop.xlane.xlu0 %255
        %257 = vadd.xlane.f32.xlu0 %v203
        %v258 = vpop.xlane.xlu0 %257
        %259 = vadd.xlane.f32.xlu0 %v204
        %v260 = vpop.xlane.xlu0 %259
        %261 = vadd.xlane.f32.xlu0 %v205
        %v262 = vpop.xlane.xlu0 %261
        %263 = vadd.xlane.f32.xlu0 %v206
        %v264 = vpop.xlane.xlu0 %263
        %265 = vadd.xlane.f32.xlu0 %v207
        %v266 = vpop.xlane.xlu0 %265
        %267 = vadd.xlane.f32.xlu0 %v208
        %v268 = vpop.xlane.xlu0 %267
        %269 = vadd.xlane.f32.xlu0 %v209
        %v270 = vpop.xlane.xlu0 %269
        %271 = vadd.xlane.f32.xlu0 %v210
        %v272 = vpop.xlane.xlu0 %271
        %273 = vadd.xlane.f32.xlu0 %v211
        %v274 = vpop.xlane.xlu0 %273
        %275 = vadd.xlane.f32.xlu0 %v212
        %v276 = vpop.xlane.xlu0 %275
        %v277 = vrcp.pop 128.0
        %v278 = vmul.f32 128.0, %v277
        %v279 = vsub.f32 1.0, %v278
        %v280 = vmul.f32 %v277, %v279
        %v281 = vadd.f32 %v277, %v280
        %vm282 = vweird.f32 %v277
        %v283 = vsel %vm282, %v277, %v281
        %v284 = vmul.f32 %v214, %v283
        %v285 = vmul.f32 %v216, %v283
        %v286 = vmul.f32 %v218, %v283
        %v287 = vmul.f32 %v220, %v283
        %v288 = vmul.f32 %v222, %v283
        %v289 = vmul.f32 %v224, %v283
        %v290 = vmul.f32 %v226, %v283
        %v291 = vmul.f32 %v228, %v283
        %v292 = vmul.f32 %v230, %v283
        %v293 = vmul.f32 %v232, %v283
        %v294 = vmul.f32 %v234, %v283
        %v295 = vmul.f32 %v236, %v283
        %v296 = vmul.f32 %v238, %v283
        %v297 = vmul.f32 %v240, %v283
        %v298 = vmul.f32 %v242, %v283
        %v299 = vmul.f32 %v244, %v283
        %v300 = vmul.f32 %v246, %v283
        %v301 = vmul.f32 %v248, %v283
        %v302 = vmul.f32 %v250, %v283
        %v303 = vmul.f32 %v252, %v283
        %v304 = vmul.f32 %v254, %v283
        %v305 = vmul.f32 %v256, %v283
        %v306 = vmul.f32 %v258, %v283
        %v307 = vmul.f32 %v260, %v283
        %v308 = vmul.f32 %v262, %v283
        %v309 = vmul.f32 %v264, %v283
        %v310 = vmul.f32 %v266, %v283
        %v311 = vmul.f32 %v268, %v283
        %v312 = vmul.f32 %v270, %v283
        %v313 = vmul.f32 %v272, %v283
        %v314 = vmul.f32 %v274, %v283
        %v315 = vmul.f32 %v276, %v283
        %v316 = vsub.f32 %v181, %v284
        %v317 = vsub.f32 %v182, %v285
        %v318 = vsub.f32 %v183, %v286
        %v319 = vsub.f32 %v184, %v287
        %v320 = vsub.f32 %v185, %v288
        %v321 = vsub.f32 %v186, %v289
        %v322 = vsub.f32 %v187, %v290
        %v323 = vsub.f32 %v188, %v291
        %v324 = vsub.f32 %v189, %v292
        %v325 = vsub.f32 %v190, %v293
        %v326 = vsub.f32 %v191, %v294
        %v327 = vsub.f32 %v192, %v295
        %v328 = vsub.f32 %v193, %v296
        %v329 = vsub.f32 %v194, %v297
        %v330 = vsub.f32 %v195, %v298
        %v331 = vsub.f32 %v196, %v299
        %v332 = vsub.f32 %v197, %v300
        %v333 = vsub.f32 %v198, %v301
        %v334 = vsub.f32 %v199, %v302
        %v335 = vsub.f32 %v200, %v303
        %v336 = vsub.f32 %v201, %v304
        %v337 = vsub.f32 %v202, %v305
        %v338 = vsub.f32 %v203, %v306
        %v339 = vsub.f32 %v204, %v307
        %v340 = vsub.f32 %v205, %v308
        %v341 = vsub.f32 %v206, %v309
        %v342 = vsub.f32 %v207, %v310
        %v343 = vsub.f32 %v208, %v311
        %v344 = vsub.f32 %v209, %v312
        %v345 = vsub.f32 %v210, %v313
        %v346 = vsub.f32 %v211, %v314
        %v347 = vsub.f32 %v212, %v315
        %v348 = vmul.f32 %v316, %v316
        %v349 = vmul.f32 %v317, %v317
        %v350 = vmul.f32 %v318, %v318
        %v351 = vmul.f32 %v319, %v319
        %v352 = vmul.f32 %v320, %v320
        %v353 = vmul.f32 %v321, %v321
        %v354 = vmul.f32 %v322, %v322
        %v355 = vmul.f32 %v323, %v323
        %v356 = vmul.f32 %v324, %v324
        %v357 = vmul.f32 %v325, %v325
        %v358 = vmul.f32 %v326, %v326
        %v359 = vmul.f32 %v327, %v327
        %v360 = vmul.f32 %v328, %v328
        %v361 = vmul.f32 %v329, %v329
        %v362 = vmul.f32 %v330, %v330
        %v363 = vmul.f32 %v331, %v331
        %v364 = vmul.f32 %v332, %v332
        %v365 = vmul.f32 %v333, %v333
        %v366 = vmul.f32 %v334, %v334
        %v367 = vmul.f32 %v335, %v335
        %v368 = vmul.f32 %v336, %v336
        %v369 = vmul.f32 %v337, %v337
        %v370 = vmul.f32 %v338, %v338
        %v371 = vmul.f32 %v339, %v339
        %v372 = vmul.f32 %v340, %v340
        %v373 = vmul.f32 %v341, %v341
        %v374 = vmul.f32 %v342, %v342
        %v375 = vmul.f32 %v343, %v343
        %v376 = vmul.f32 %v344, %v344
        %v377 = vmul.f32 %v345, %v345
        %v378 = vmul.f32 %v346, %v346
        %v379 = vmul.f32 %v347, %v347
        %380 = vadd.xlane.f32.xlu0 %v348
        %v381 = vpop.xlane.xlu0 %380
        %382 = vadd.xlane.f32.xlu0 %v349
        %v383 = vpop.xlane.xlu0 %382
        %384 = vadd.xlane.f32.xlu0 %v350
        %v385 = vpop.xlane.xlu0 %384
        %386 = vadd.xlane.f32.xlu0 %v351
        %v387 = vpop.xlane.xlu0 %386
        %388 = vadd.xlane.f32.xlu0 %v352
        %v389 = vpop.xlane.xlu0 %388
        %390 = vadd.xlane.f32.xlu0 %v353
        %v391 = vpop.xlane.xlu0 %390
        %392 = vadd.xlane.f32.xlu0 %v354
        %v393 = vpop.xlane.xlu0 %392
        %394 = vadd.xlane.f32.xlu0 %v355
        %v395 = vpop.xlane.xlu0 %394
        %396 = vadd.xlane.f32.xlu0 %v356
        %v397 = vpop.xlane.xlu0 %396
        %398 = vadd.xlane.f32.xlu0 %v357
        %v399 = vpop.xlane.xlu0 %398
        %400 = vadd.xlane.f32.xlu0 %v358
        %v401 = vpop.xlane.xlu0 %400
        %402 = vadd.xlane.f32.xlu0 %v359
        %v403 = vpop.xlane.xlu0 %402
        %404 = vadd.xlane.f32.xlu0 %v360
        %v405 = vpop.xlane.xlu0 %404
        %406 = vadd.xlane.f32.xlu0 %v361
        %v407 = vpop.xlane.xlu0 %406
        %408 = vadd.xlane.f32.xlu0 %v362
        %v409 = vpop.xlane.xlu0 %408
        %410 = vadd.xlane.f32.xlu0 %v363
        %v411 = vpop.xlane.xlu0 %410
        %412 = vadd.xlane.f32.xlu0 %v364
        %v413 = vpop.xlane.xlu0 %412
        %414 = vadd.xlane.f32.xlu0 %v365
        %v415 = vpop.xlane.xlu0 %414
        %416 = vadd.xlane.f32.xlu0 %v366
        %v417 = vpop.xlane.xlu0 %416
        %418 = vadd.xlane.f32.xlu0 %v367
        %v419 = vpop.xlane.xlu0 %418
        %420 = vadd.xlane.f32.xlu0 %v368
        %v421 = vpop.xlane.xlu0 %420
        %422 = vadd.xlane.f32.xlu0 %v369
        %v423 = vpop.xlane.xlu0 %422
        %424 = vadd.xlane.f32.xlu0 %v370
        %v425 = vpop.xlane.xlu0 %424
        %426 = vadd.xlane.f32.xlu0 %v371
        %v427 = vpop.xlane.xlu0 %426
        %428 = vadd.xlane.f32.xlu0 %v372
        %v429 = vpop.xlane.xlu0 %428
        %430 = vadd.xlane.f32.xlu0 %v373
        %v431 = vpop.xlane.xlu0 %430
        %432 = vadd.xlane.f32.xlu0 %v374
        %v433 = vpop.xlane.xlu0 %432
        %434 = vadd.xlane.f32.xlu0 %v375
        %v435 = vpop.xlane.xlu0 %434
        %436 = vadd.xlane.f32.xlu0 %v376
        %v437 = vpop.xlane.xlu0 %436
        %438 = vadd.xlane.f32.xlu0 %v377
        %v439 = vpop.xlane.xlu0 %438
        %440 = vadd.xlane.f32.xlu0 %v378
        %v441 = vpop.xlane.xlu0 %440
        %442 = vadd.xlane.f32.xlu0 %v379
        %v443 = vpop.xlane.xlu0 %442
        %v444 = vmul.f32 %v381, %v283
        %v445 = vmul.f32 %v383, %v283
        %v446 = vmul.f32 %v385, %v283
        %v447 = vmul.f32 %v387, %v283
        %v448 = vmul.f32 %v389, %v283
        %v449 = vmul.f32 %v391, %v283
        %v450 = vmul.f32 %v393, %v283
        %v451 = vmul.f32 %v395, %v283
        %v452 = vmul.f32 %v397, %v283
        %v453 = vmul.f32 %v399, %v283
        %v454 = vmul.f32 %v401, %v283
        %v455 = vmul.f32 %v403, %v283
        %v456 = vmul.f32 %v405, %v283
        %v457 = vmul.f32 %v407, %v283
        %v458 = vmul.f32 %v409, %v283
        %v459 = vmul.f32 %v411, %v283
        %v460 = vmul.f32 %v413, %v283
        %v461 = vmul.f32 %v415, %v283
        %v462 = vmul.f32 %v417, %v283
        %v463 = vmul.f32 %v419, %v283
        %v464 = vmul.f32 %v421, %v283
        %v465 = vmul.f32 %v423, %v283
        %v466 = vmul.f32 %v425, %v283
        %v467 = vmul.f32 %v427, %v283
        %v468 = vmul.f32 %v429, %v283
        %v469 = vmul.f32 %v431, %v283
        %v470 = vmul.f32 %v433, %v283
        %v471 = vmul.f32 %v435, %v283
        %v472 = vmul.f32 %v437, %v283
        %v473 = vmul.f32 %v439, %v283
        %v474 = vmul.f32 %v441, %v283
        %v475 = vmul.f32 %v443, %v283
        %v476 = vld [vmem:[#allocation5] sm:$0x1]
        %v477 = vadd.f32 %v444, 1e-05
        %v478 = vadd.f32 %v445, 1e-05
        %v479 = vadd.f32 %v446, 1e-05
        %v480 = vadd.f32 %v447, 1e-05
        %v481 = vadd.f32 %v448, 1e-05
        %v482 = vadd.f32 %v449, 1e-05
        %v483 = vadd.f32 %v450, 1e-05
        %v484 = vadd.f32 %v451, 1e-05
        %v485 = vadd.f32 %v452, 1e-05
        %v486 = vadd.f32 %v453, 1e-05
        %v487 = vadd.f32 %v454, 1e-05
        %v488 = vadd.f32 %v455, 1e-05
        %v489 = vadd.f32 %v456, 1e-05
        %v490 = vadd.f32 %v457, 1e-05
        %v491 = vadd.f32 %v458, 1e-05
        %v492 = vadd.f32 %v459, 1e-05
        %v493 = vadd.f32 %v460, 1e-05
        %v494 = vadd.f32 %v461, 1e-05
        %v495 = vadd.f32 %v462, 1e-05
        %v496 = vadd.f32 %v463, 1e-05
        %v497 = vadd.f32 %v464, 1e-05
        %v498 = vadd.f32 %v465, 1e-05
        %v499 = vadd.f32 %v466, 1e-05
        %v500 = vadd.f32 %v467, 1e-05
        %v501 = vadd.f32 %v468, 1e-05
        %v502 = vadd.f32 %v469, 1e-05
        %v503 = vadd.f32 %v470, 1e-05
        %v504 = vadd.f32 %v471, 1e-05
        %v505 = vadd.f32 %v472, 1e-05
        %v506 = vadd.f32 %v473, 1e-05
        %v507 = vadd.f32 %v474, 1e-05
        %v508 = vadd.f32 %v475, 1e-05
        %v509 = vrsqrt.pop %v477
        %v510 = vmul.f32 %v509, %v477
        %v511 = vmul.f32 %v510, %v509
        %v512 = vmul.f32 0.5, %v511
        %v513 = vsub.f32 1.5, %v512
        %v514 = vmul.f32 %v509, %v513
        %vm515 = vweird.f32 %v477
        %vm516 = vweird.f32 %v509
        %vm517 = vmor %vm515, %vm516
        %v518 = vsel %vm517, %v509, %v514
        %v519 = vrsqrt.pop %v478
        %v520 = vmul.f32 %v519, %v478
        %v521 = vmul.f32 %v520, %v519
        %v522 = vmul.f32 0.5, %v521
        %v523 = vsub.f32 1.5, %v522
        %v524 = vmul.f32 %v519, %v523
        %vm525 = vweird.f32 %v478
        %vm526 = vweird.f32 %v519
        %vm527 = vmor %vm525, %vm526
        %v528 = vsel %vm527, %v519, %v524
        %v529 = vrsqrt.pop %v479
        %v530 = vmul.f32 %v529, %v479
        %v531 = vmul.f32 %v530, %v529
        %v532 = vmul.f32 0.5, %v531
        %v533 = vsub.f32 1.5, %v532
        %v534 = vmul.f32 %v529, %v533
        %vm535 = vweird.f32 %v479
        %vm536 = vweird.f32 %v529
        %vm537 = vmor %vm535, %vm536
        %v538 = vsel %vm537, %v529, %v534
        %v539 = vrsqrt.pop %v480
        %v540 = vmul.f32 %v539, %v480
        %v541 = vmul.f32 %v540, %v539
        %v542 = vmul.f32 0.5, %v541
        %v543 = vsub.f32 1.5, %v542
        %v544 = vmul.f32 %v539, %v543
        %vm545 = vweird.f32 %v480
        %vm546 = vweird.f32 %v539
        %vm547 = vmor %vm545, %vm546
        %v548 = vsel %vm547, %v539, %v544
        %v549 = vrsqrt.pop %v481
        %v550 = vmul.f32 %v549, %v481
        %v551 = vmul.f32 %v550, %v549
        %v552 = vmul.f32 0.5, %v551
        %v553 = vsub.f32 1.5, %v552
        %v554 = vmul.f32 %v549, %v553
        %vm555 = vweird.f32 %v481
        %vm556 = vweird.f32 %v549
        %vm557 = vmor %vm555, %vm556
        %v558 = vsel %vm557, %v549, %v554
        %v559 = vrsqrt.pop %v482
        %v560 = vmul.f32 %v559, %v482
        %v561 = vmul.f32 %v560, %v559
        %v562 = vmul.f32 0.5, %v561
        %v563 = vsub.f32 1.5, %v562
        %v564 = vmul.f32 %v559, %v563
        %vm565 = vweird.f32 %v482
        %vm566 = vweird.f32 %v559
        %vm567 = vmor %vm565, %vm566
        %v568 = vsel %vm567, %v559, %v564
        %v569 = vrsqrt.pop %v483
        %v570 = vmul.f32 %v569, %v483
        %v571 = vmul.f32 %v570, %v569
        %v572 = vmul.f32 0.5, %v571
        %v573 = vsub.f32 1.5, %v572
        %v574 = vmul.f32 %v569, %v573
        %vm575 = vweird.f32 %v483
        %vm576 = vweird.f32 %v569
        %vm577 = vmor %vm575, %vm576
        %v578 = vsel %vm577, %v569, %v574
        %v579 = vrsqrt.pop %v484
        %v580 = vmul.f32 %v579, %v484
        %v581 = vmul.f32 %v580, %v579
        %v582 = vmul.f32 0.5, %v581
        %v583 = vsub.f32 1.5, %v582
        %v584 = vmul.f32 %v579, %v583
        %vm585 = vweird.f32 %v484
        %vm586 = vweird.f32 %v579
        %vm587 = vmor %vm585, %vm586
        %v588 = vsel %vm587, %v579, %v584
        %v589 = vrsqrt.pop %v485
        %v590 = vmul.f32 %v589, %v485
        %v591 = vmul.f32 %v590, %v589
        %v592 = vmul.f32 0.5, %v591
        %v593 = vsub.f32 1.5, %v592
        %v594 = vmul.f32 %v589, %v593
        %vm595 = vweird.f32 %v485
        %vm596 = vweird.f32 %v589
        %vm597 = vmor %vm595, %vm596
        %v598 = vsel %vm597, %v589, %v594
        %v599 = vrsqrt.pop %v486
        %v600 = vmul.f32 %v599, %v486
        %v601 = vmul.f32 %v600, %v599
        %v602 = vmul.f32 0.5, %v601
        %v603 = vsub.f32 1.5, %v602
        %v604 = vmul.f32 %v599, %v603
        %vm605 = vweird.f32 %v486
        %vm606 = vweird.f32 %v599
        %vm607 = vmor %vm605, %vm606
        %v608 = vsel %vm607, %v599, %v604
        %v609 = vrsqrt.pop %v487
        %v610 = vmul.f32 %v609, %v487
        %v611 = vmul.f32 %v610, %v609
        %v612 = vmul.f32 0.5, %v611
        %v613 = vsub.f32 1.5, %v612
        %v614 = vmul.f32 %v609, %v613
        %vm615 = vweird.f32 %v487
        %vm616 = vweird.f32 %v609
        %vm617 = vmor %vm615, %vm616
        %v618 = vsel %vm617, %v609, %v614
        %v619 = vrsqrt.pop %v488
        %v620 = vmul.f32 %v619, %v488
        %v621 = vmul.f32 %v620, %v619
        %v622 = vmul.f32 0.5, %v621
        %v623 = vsub.f32 1.5, %v622
        %v624 = vmul.f32 %v619, %v623
        %vm625 = vweird.f32 %v488
        %vm626 = vweird.f32 %v619
        %vm627 = vmor %vm625, %vm626
        %v628 = vsel %vm627, %v619, %v624
        %v629 = vrsqrt.pop %v489
        %v630 = vmul.f32 %v629, %v489
        %v631 = vmul.f32 %v630, %v629
        %v632 = vmul.f32 0.5, %v631
        %v633 = vsub.f32 1.5, %v632
        %v634 = vmul.f32 %v629, %v633
        %vm635 = vweird.f32 %v489
        %vm636 = vweird.f32 %v629
        %vm637 = vmor %vm635, %vm636
        %v638 = vsel %vm637, %v629, %v634
        %v639 = vrsqrt.pop %v490
        %v640 = vmul.f32 %v639, %v490
        %v641 = vmul.f32 %v640, %v639
        %v642 = vmul.f32 0.5, %v641
        %v643 = vsub.f32 1.5, %v642
        %v644 = vmul.f32 %v639, %v643
        %vm645 = vweird.f32 %v490
        %vm646 = vweird.f32 %v639
        %vm647 = vmor %vm645, %vm646
        %v648 = vsel %vm647, %v639, %v644
        %v649 = vrsqrt.pop %v491
        %v650 = vmul.f32 %v649, %v491
        %v651 = vmul.f32 %v650, %v649
        %v652 = vmul.f32 0.5, %v651
        %v653 = vsub.f32 1.5, %v652
        %v654 = vmul.f32 %v649, %v653
        %vm655 = vweird.f32 %v491
        %vm656 = vweird.f32 %v649
        %vm657 = vmor %vm655, %vm656
        %v658 = vsel %vm657, %v649, %v654
        %v659 = vrsqrt.pop %v492
        %v660 = vmul.f32 %v659, %v492
        %v661 = vmul.f32 %v660, %v659
        %v662 = vmul.f32 0.5, %v661
        %v663 = vsub.f32 1.5, %v662
        %v664 = vmul.f32 %v659, %v663
        %vm665 = vweird.f32 %v492
        %vm666 = vweird.f32 %v659
        %vm667 = vmor %vm665, %vm666
        %v668 = vsel %vm667, %v659, %v664
        %v669 = vrsqrt.pop %v493
        %v670 = vmul.f32 %v669, %v493
        %v671 = vmul.f32 %v670, %v669
        %v672 = vmul.f32 0.5, %v671
        %v673 = vsub.f32 1.5, %v672
        %v674 = vmul.f32 %v669, %v673
        %vm675 = vweird.f32 %v493
        %vm676 = vweird.f32 %v669
        %vm677 = vmor %vm675, %vm676
        %v678 = vsel %vm677, %v669, %v674
        %v679 = vrsqrt.pop %v494
        %v680 = vmul.f32 %v679, %v494
        %v681 = vmul.f32 %v680, %v679
        %v682 = vmul.f32 0.5, %v681
        %v683 = vsub.f32 1.5, %v682
        %v684 = vmul.f32 %v679, %v683
        %vm685 = vweird.f32 %v494
        %vm686 = vweird.f32 %v679
        %vm687 = vmor %vm685, %vm686
        %v688 = vsel %vm687, %v679, %v684
        %v689 = vrsqrt.pop %v495
        %v690 = vmul.f32 %v689, %v495
        %v691 = vmul.f32 %v690, %v689
        %v692 = vmul.f32 0.5, %v691
        %v693 = vsub.f32 1.5, %v692
        %v694 = vmul.f32 %v689, %v693
        %vm695 = vweird.f32 %v495
        %vm696 = vweird.f32 %v689
        %vm697 = vmor %vm695, %vm696
        %v698 = vsel %vm697, %v689, %v694
        %v699 = vrsqrt.pop %v496
        %v700 = vmul.f32 %v699, %v496
        %v701 = vmul.f32 %v700, %v699
        %v702 = vmul.f32 0.5, %v701
        %v703 = vsub.f32 1.5, %v702
        %v704 = vmul.f32 %v699, %v703
        %vm705 = vweird.f32 %v496
        %vm706 = vweird.f32 %v699
        %vm707 = vmor %vm705, %vm706
        %v708 = vsel %vm707, %v699, %v704
        %v709 = vrsqrt.pop %v497
        %v710 = vmul.f32 %v709, %v497
        %v711 = vmul.f32 %v710, %v709
        %v712 = vmul.f32 0.5, %v711
        %v713 = vsub.f32 1.5, %v712
        %v714 = vmul.f32 %v709, %v713
        %vm715 = vweird.f32 %v497
        %vm716 = vweird.f32 %v709
        %vm717 = vmor %vm715, %vm716
        %v718 = vsel %vm717, %v709, %v714
        %v719 = vrsqrt.pop %v498
        %v720 = vmul.f32 %v719, %v498
        %v721 = vmul.f32 %v720, %v719
        %v722 = vmul.f32 0.5, %v721
        %v723 = vsub.f32 1.5, %v722
        %v724 = vmul.f32 %v719, %v723
        %vm725 = vweird.f32 %v498
        %vm726 = vweird.f32 %v719
        %vm727 = vmor %vm725, %vm726
        %v728 = vsel %vm727, %v719, %v724
        %v729 = vrsqrt.pop %v499
        %v730 = vmul.f32 %v729, %v499
        %v731 = vmul.f32 %v730, %v729
        %v732 = vmul.f32 0.5, %v731
        %v733 = vsub.f32 1.5, %v732
        %v734 = vmul.f32 %v729, %v733
        %vm735 = vweird.f32 %v499
        %vm736 = vweird.f32 %v729
        %vm737 = vmor %vm735, %vm736
        %v738 = vsel %vm737, %v729, %v734
        %v739 = vrsqrt.pop %v500
        %v740 = vmul.f32 %v739, %v500
        %v741 = vmul.f32 %v740, %v739
        %v742 = vmul.f32 0.5, %v741
        %v743 = vsub.f32 1.5, %v742
        %v744 = vmul.f32 %v739, %v743
        %vm745 = vweird.f32 %v500
        %vm746 = vweird.f32 %v739
        %vm747 = vmor %vm745, %vm746
        %v748 = vsel %vm747, %v739, %v744
        %v749 = vrsqrt.pop %v501
        %v750 = vmul.f32 %v749, %v501
        %v751 = vmul.f32 %v750, %v749
        %v752 = vmul.f32 0.5, %v751
        %v753 = vsub.f32 1.5, %v752
        %v754 = vmul.f32 %v749, %v753
        %vm755 = vweird.f32 %v501
        %vm756 = vweird.f32 %v749
        %vm757 = vmor %vm755, %vm756
        %v758 = vsel %vm757, %v749, %v754
        %v759 = vrsqrt.pop %v502
        %v760 = vmul.f32 %v759, %v502
        %v761 = vmul.f32 %v760, %v759
        %v762 = vmul.f32 0.5, %v761
        %v763 = vsub.f32 1.5, %v762
        %v764 = vmul.f32 %v759, %v763
        %vm765 = vweird.f32 %v502
        %vm766 = vweird.f32 %v759
        %vm767 = vmor %vm765, %vm766
        %v768 = vsel %vm767, %v759, %v764
        %v769 = vrsqrt.pop %v503
        %v770 = vmul.f32 %v769, %v503
        %v771 = vmul.f32 %v770, %v769
        %v772 = vmul.f32 0.5, %v771
        %v773 = vsub.f32 1.5, %v772
        %v774 = vmul.f32 %v769, %v773
        %vm775 = vweird.f32 %v503
        %vm776 = vweird.f32 %v769
        %vm777 = vmor %vm775, %vm776
        %v778 = vsel %vm777, %v769, %v774
        %v779 = vrsqrt.pop %v504
        %v780 = vmul.f32 %v779, %v504
        %v781 = vmul.f32 %v780, %v779
        %v782 = vmul.f32 0.5, %v781
        %v783 = vsub.f32 1.5, %v782
        %v784 = vmul.f32 %v779, %v783
        %vm785 = vweird.f32 %v504
        %vm786 = vweird.f32 %v779
        %vm787 = vmor %vm785, %vm786
        %v788 = vsel %vm787, %v779, %v784
        %v789 = vrsqrt.pop %v505
        %v790 = vmul.f32 %v789, %v505
        %v791 = vmul.f32 %v790, %v789
        %v792 = vmul.f32 0.5, %v791
        %v793 = vsub.f32 1.5, %v792
        %v794 = vmul.f32 %v789, %v793
        %vm795 = vweird.f32 %v505
        %vm796 = vweird.f32 %v789
        %vm797 = vmor %vm795, %vm796
        %v798 = vsel %vm797, %v789, %v794
        %v799 = vrsqrt.pop %v506
        %v800 = vmul.f32 %v799, %v506
        %v801 = vmul.f32 %v800, %v799
        %v802 = vmul.f32 0.5, %v801
        %v803 = vsub.f32 1.5, %v802
        %v804 = vmul.f32 %v799, %v803
        %vm805 = vweird.f32 %v506
        %vm806 = vweird.f32 %v799
        %vm807 = vmor %vm805, %vm806
        %v808 = vsel %vm807, %v799, %v804
        %v809 = vrsqrt.pop %v507
        %v810 = vmul.f32 %v809, %v507
        %v811 = vmul.f32 %v810, %v809
        %v812 = vmul.f32 0.5, %v811
        %v813 = vsub.f32 1.5, %v812
        %v814 = vmul.f32 %v809, %v813
        %vm815 = vweird.f32 %v507
        %vm816 = vweird.f32 %v809
        %vm817 = vmor %vm815, %vm816
        %v818 = vsel %vm817, %v809, %v814
        %v819 = vrsqrt.pop %v508
        %v820 = vmul.f32 %v819, %v508
        %v821 = vmul.f32 %v820, %v819
        %v822 = vmul.f32 0.5, %v821
        %v823 = vsub.f32 1.5, %v822
        %v824 = vmul.f32 %v819, %v823
        %vm825 = vweird.f32 %v508
        %vm826 = vweird.f32 %v819
        %vm827 = vmor %vm825, %vm826
        %v828 = vsel %vm827, %v819, %v824
        %v829 = vmul.f32 %v181, %v518
        %v830 = vmul.f32 %v182, %v528
        %v831 = vmul.f32 %v183, %v538
        %v832 = vmul.f32 %v184, %v548
        %v833 = vmul.f32 %v185, %v558
        %v834 = vmul.f32 %v186, %v568
        %v835 = vmul.f32 %v187, %v578
        %v836 = vmul.f32 %v188, %v588
        %v837 = vmul.f32 %v189, %v598
        %v838 = vmul.f32 %v190, %v608
        %v839 = vmul.f32 %v191, %v618
        %v840 = vmul.f32 %v192, %v628
        %v841 = vmul.f32 %v193, %v638
        %v842 = vmul.f32 %v194, %v648
        %v843 = vmul.f32 %v195, %v658
        %v844 = vmul.f32 %v196, %v668
        %v845 = vmul.f32 %v197, %v678
        %v846 = vmul.f32 %v198, %v688
        %v847 = vmul.f32 %v199, %v698
        %v848 = vmul.f32 %v200, %v708
        %v849 = vmul.f32 %v201, %v718
        %v850 = vmul.f32 %v202, %v728
        %v851 = vmul.f32 %v203, %v738
        %v852 = vmul.f32 %v204, %v748
        %v853 = vmul.f32 %v205, %v758
        %v854 = vmul.f32 %v206, %v768
        %v855 = vmul.f32 %v207, %v778
        %v856 = vmul.f32 %v208, %v788
        %v857 = vmul.f32 %v209, %v798
        %v858 = vmul.f32 %v210, %v808
        %v859 = vmul.f32 %v211, %v818
        %v860 = vmul.f32 %v212, %v828
        %v862 = vperm.slane %v476, 0
        %v864 = vmul.f32 %v829, %v862
        %v865 = vmul.f32 %v830, %v862
        %v866 = vmul.f32 %v831, %v862
        %v867 = vmul.f32 %v832, %v862
        %v868 = vmul.f32 %v833, %v862
        %v869 = vmul.f32 %v834, %v862
        %v870 = vmul.f32 %v835, %v862
        %v871 = vmul.f32 %v836, %v862
        %v872 = vmul.f32 %v837, %v862
        %v873 = vmul.f32 %v838, %v862
        %v874 = vmul.f32 %v839, %v862
        %v875 = vmul.f32 %v840, %v862
        %v876 = vmul.f32 %v841, %v862
        %v877 = vmul.f32 %v842, %v862
        %v878 = vmul.f32 %v843, %v862
        %v879 = vmul.f32 %v844, %v862
        %v880 = vmul.f32 %v845, %v862
        %v881 = vmul.f32 %v846, %v862
        %v882 = vmul.f32 %v847, %v862
        %v883 = vmul.f32 %v848, %v862
        %v884 = vmul.f32 %v849, %v862
        %v885 = vmul.f32 %v850, %v862
        %v886 = vmul.f32 %v851, %v862
        %v887 = vmul.f32 %v852, %v862
        %v888 = vmul.f32 %v853, %v862
        %v889 = vmul.f32 %v854, %v862
        %v890 = vmul.f32 %v855, %v862
        %v891 = vmul.f32 %v856, %v862
        %v892 = vmul.f32 %v857, %v862
        %v893 = vmul.f32 %v858, %v862
        %v894 = vmul.f32 %v859, %v862
        %v895 = vmul.f32 %v860, %v862
        %896 = vst [vmem:[%s178] sm:$0xff] %v864
        %897 = vst [vmem:[%s178 + $0x8] sm:$0xff] %v865
        %898 = vst [vmem:[%s178 + $0x10] sm:$0xff] %v866
        %899 = vst [vmem:[%s178 + $0x18] sm:$0xff] %v867
        %900 = vst [vmem:[%s178 + $0x20] sm:$0xff] %v868
        %901 = vst [vmem:[%s178 + $0x28] sm:$0xff] %v869
        %902 = vst [vmem:[%s178 + $0x30] sm:$0xff] %v870
        %903 = vst [vmem:[%s178 + $0x38] sm:$0xff] %v871
        %904 = vst [vmem:[%s178 + $0x40] sm:$0xff] %v872
        %905 = vst [vmem:[%s178 + $0x48] sm:$0xff] %v873
        %906 = vst [vmem:[%s178 + $0x50] sm:$0xff] %v874
        %907 = vst [vmem:[%s178 + $0x58] sm:$0xff] %v875
        %908 = vst [vmem:[%s178 + $0x60] sm:$0xff] %v876
        %909 = vst [vmem:[%s178 + $0x68] sm:$0xff] %v877
        %910 = vst [vmem:[%s178 + $0x70] sm:$0xff] %v878
        %911 = vst [vmem:[%s178 + $0x78] sm:$0xff] %v879
        %912 = vst [vmem:[%s178 + $0x80] sm:$0xff] %v880
        %913 = vst [vmem:[%s178 + $0x88] sm:$0xff] %v881
        %914 = vst [vmem:[%s178 + $0x90] sm:$0xff] %v882
        %915 = vst [vmem:[%s178 + $0x98] sm:$0xff] %v883
        %916 = vst [vmem:[%s178 + $0xa0] sm:$0xff] %v884
        %917 = vst [vmem:[%s178 + $0xa8] sm:$0xff] %v885
        %918 = vst [vmem:[%s178 + $0xb0] sm:$0xff] %v886
        %919 = vst [vmem:[%s178 + $0xb8] sm:$0xff] %v887
        %920 = vst [vmem:[%s178 + $0xc0] sm:$0xff] %v888
        %921 = vst [vmem:[%s178 + $0xc8] sm:$0xff] %v889
        %922 = vst [vmem:[%s178 + $0xd0] sm:$0xff] %v890
        %923 = vst [vmem:[%s178 + $0xd8] sm:$0xff] %v891
        %924 = vst [vmem:[%s178 + $0xe0] sm:$0xff] %v892
        %925 = vst [vmem:[%s178 + $0xe8] sm:$0xff] %v893
        %926 = vst [vmem:[%s178 + $0xf0] sm:$0xff] %v894
        %927 = vst [vmem:[%s178 + $0xf8] sm:$0xff] %v895
        %s928 = sand.u32 %s75, 1
        %s929 = scalar_lea.sflag [#allocation4], %s928
        %s930 = sand.u32 %s75, 1
        %s931 = smul.addr %s930, 256
        %s932 = scalar_lea.vmem [#allocation7], %s931
        // Predicated region
        $region37: #{tpu_custom_call.1} parent=27 // pred_check
          %p933 = pneg %p85
        $region38: #{tpu_custom_call.1} parent=27 // pred_check_branch
          %935 = sbr.rel (%p933) target = $region40
        $region39: #{tpu_custom_call.1} parent=27 // pred_region
          %s936 = smul.u32 32, %s20
          %938 = vsyncadd %s929, 0
          %s939 = smul.addr %s936, 8
          %s940 = scalar_lea.hbm %s2, %s939
          %s941 = sshll.u32 %s932, 4
          %s942 = int_to_ptr.vmem [resolvable:$true] %s941
          %s943 = sshll.u32 %s940, 4
          %s944 = int_to_ptr.hbm [resolvable:$true] %s943
          %949 = dma.vmem_to_hbm [thread:$0]  %s942, 4096, %s944, %s929, 128, 128, 8
        $region40: #{tpu_custom_call.1} parent=27 // pred_fallthru
          _
      $region28: #{tpu_custom_call.1} parent=5 // pred_fallthru
        _
      %p950 = scmp.le.s32.totalorder 2, %s15
      // Predicated region
      $region41: #{tpu_custom_call.1} parent=5 // pred_check
        %p951 = pneg %p950
      $region42: #{tpu_custom_call.1} parent=5 // pred_check_branch
        %953 = sbr.rel (%p951) target = $region44
      $region43: #{tpu_custom_call.1} parent=5 // pred_region
        %s954 = ssub.s32 %s15, 2
        // Predicated region
        $region45: #{tpu_custom_call.1} parent=43 // pred_check
          %p955 = pneg %p91
        $region46: #{tpu_custom_call.1} parent=43 // pred_check_branch
          %957 = sbr.rel (%p955) target = $region48
        $region47: #{tpu_custom_call.1} parent=43 // pred_region
          %s958 = sand.u32 %s76, 1
          %s959 = scalar_lea.sflag [#allocation4], %s958
          %s960 = sand.u32 %s76, 1
          %s961 = smul.addr %s960, 256
          %s962 = scalar_lea.vmem [#allocation7], %s961
          %964 = dma.done %s959, 4096
        $region48: #{tpu_custom_call.1} parent=43 // pred_fallthru
          _
      $region44: #{tpu_custom_call.1} parent=5 // pred_fallthru
        _
    $region6: #{tpu_custom_call.1} parent=1 // loop_footer
      %s19 = sadd.s32 1, %s15
    $region7: #{tpu_custom_call.1} parent=1 // loop_footer_branch
      %14 = sbr.rel target = $region3
    $region8: #{tpu_custom_call.1} parent=1 // loop_exit
      _
    %965 = vsyncpa [#allocation3], 1
    %s966 = scalar_lea.sflag [#allocation3], 1
    %967 = vsyncpa %s966, 1
    %968 = vsyncpa [#allocation6], 1
    %969 = vsyncpa [#allocation4], 1
    %s970 = scalar_lea.sflag [#allocation4], 1
    %971 = vsyncpa %s970, 1

</llo_original>
